<compile_context>
chip_gen: v7x
topology: tpu7x:2x2x1
jax: 0.10.0
libtpu: 0.0.40
codegen_flags: <defaults>
</compile_context>

<pallas_src>
import numpy as np
import jax
import jax.numpy as jnp
from jax.experimental import pallas as pl
from jax.experimental.pallas import tpu as pltpu

INPUT_SIZE = 20          # conv stack maps length 20 -> 5 (required by Linear(5, output_size))
OUTPUT_SIZE = 2
FEAT_PAD = 128           # folded feature width (all layer widths <= 128 lanes)
BT_MAX = 2048            # max batch rows per grid step
SUB_ALIGN = 16           # batch-tile alignment (covers bf16 sublane packing)
MIN_PAR_ROWS = 256       # min rows/step worth splitting across 2 TCs (v7x)

CONV_CFG = [
    # (in_ch, out_ch, kernel, stride, pad)
    (1, 3, 3, 1, 1),
    (3, 8, 4, 2, 1),
    (8, 4, 3, 2, 1),
    (4, 1, 3, 1, 1),
]
N_LAYERS = len(CONV_CFG) + 1     # 4 convs + final linear


def _round_up(a, m):
    return (a + m - 1) // m * m


def conv_out_len(L, K, s, p):
    return (L + 2 * p - K) // s + 1


def make_gather(L_in, K, stride, pad):
    """0/1 matrix per tap: G[k, i, t] = 1 iff input index i feeds output t for tap k."""
    L_out = conv_out_len(L_in, K, stride, pad)
    G = np.zeros((K, L_in, L_out), np.float32)
    for k in range(K):
        for t in range(L_out):
            i = stride * t + k - pad
            if 0 <= i < L_in:
                G[k, i, t] = 1.0
    return G


def init_params(key):
    """Deterministic PyTorch-style uniform init (bound = 1/sqrt(fan_in))."""
    params = {}
    keys = jax.random.split(key, 2 * len(CONV_CFG) + 2)
    ki = 0
    for li, (cin, cout, K, s, p) in enumerate(CONV_CFG):
        bound = 1.0 / np.sqrt(cin * K)
        params[f"conv{li+1}_w"] = jax.random.uniform(
            keys[ki], (cout, cin, K), jnp.float32, -bound, bound); ki += 1
        params[f"conv{li+1}_b"] = jax.random.uniform(
            keys[ki], (cout,), jnp.float32, -bound, bound); ki += 1
    bound = 1.0 / np.sqrt(5)
    params["lin_w"] = jax.random.uniform(
        keys[ki], (OUTPUT_SIZE, 5), jnp.float32, -bound, bound); ki += 1
    params["lin_b"] = jax.random.uniform(
        keys[ki], (OUTPUT_SIZE,), jnp.float32, -bound, bound)
    return params


# --------------------- host-side weight folding (runs once) -----------------

def fold_params(params, L):
    """Fold each conv (and the final Linear) into one (F_in, F_out) matmul
    matrix + flat bias, zero-padded to (FEAT_PAD, FEAT_PAD) / (1, FEAT_PAD).

    Activation layout is channel-major flat: a_flat[b, c*L + i] = a[b, c, i].
    Padded weight rows/cols and bias lanes are exactly 0, so padded lanes stay
    0 through bias + ReLU.
    """
    mats, biases = [], []
    Lc = L
    for li, (cin, cout, K, s, p) in enumerate(CONV_CFG):
        w = np.asarray(params[f"conv{li+1}_w"])      # (O, C, K)
        b = np.asarray(params[f"conv{li+1}_b"])      # (O,)
        G = make_gather(Lc, K, s, p)                 # (K, L_in, L_out)
        L_out = G.shape[2]
        # A[(c,i),(o,t)] = sum_k W[o,c,k] * G[k,i,t]
        A = np.einsum("ock,kit->ciot", w, G).reshape(cin * Lc, cout * L_out)
        bias = np.repeat(b, L_out)                   # flat bias, o-major
        mats.append(A); biases.append(bias)
        Lc = L_out
    assert Lc == 5, "final conv length must be 5 to match Linear(5, output_size)"

    lw = np.asarray(params["lin_w"])                 # (2, 5)
    lb = np.asarray(params["lin_b"])                 # (2,)
    mats.append(lw.T)                                # (5, 2)
    biases.append(lb)

    A_stack = np.zeros((N_LAYERS, FEAT_PAD, FEAT_PAD), np.float32)
    b_stack = np.zeros((N_LAYERS, 1, FEAT_PAD), np.float32)
    for l, (A, bias) in enumerate(zip(mats, biases)):
        A_stack[l, :A.shape[0], :A.shape[1]] = A
        b_stack[l, 0, :bias.shape[0]] = bias
    return A_stack, b_stack


# ----------------------------- Pallas kernel --------------------------------

def mla_kernel(x_ref, a_ref, b_ref, out_ref, xpad_ref):
    # x_ref:    (Bt, 20)        slim batch tile (compute dtype) -- real features only in HBM
    # a_ref:    (5, 128, 128)   folded per-layer weight matrices (compute dtype, VMEM-resident)
    # b_ref:    (5, 1, 128)     per-layer biases (f32, VMEM-resident)
    # out_ref:  (Bt, 2)         valid output lanes only (f32)
    # xpad_ref: (Bt, 128)       VMEM scratch: lane-padded activation for the first matmul
    w_dtype = a_ref.dtype
    L = x_ref.shape[1]

    # Lane-pad the slim input tile to the folded 128-wide feature layout (in VMEM only).
    xpad_ref[...] = jnp.zeros_like(xpad_ref)
    xpad_ref[:, :L] = x_ref[...].astype(w_dtype)
    h = xpad_ref[...]

    for l in range(N_LAYERS - 1):                     # statically unrolled: conv1..conv4 (+ReLU)
        z = jnp.dot(h, a_ref[l], preferred_element_type=jnp.float32) + b_ref[l]
        h = jnp.maximum(z, 0.0).astype(w_dtype)
    out = jnp.dot(h, a_ref[N_LAYERS - 1],
                  preferred_element_type=jnp.float32) + b_ref[N_LAYERS - 1]
    out_ref[...] = out[:, :out_ref.shape[1]].astype(out_ref.dtype)


def _resident_spec(shape):
    """Constant-index BlockSpec for data that is fetched once and stays VMEM-resident."""
    idx = lambda i: (0,) * len(shape)
    try:
        # Single pipeline buffer: constant index_map, never revisited.
        return pl.BlockSpec(shape, idx, pipeline_mode=pl.Buffered(1))
    except Exception:
        return pl.BlockSpec(shape, idx)


def make_forward(params, *, compute_dtype=jnp.bfloat16, bt_max=BT_MAX):
    """Fold + upload weights once; return a jit'ed forward: (B, 20) f32 -> (B, 2) f32."""
    A_np, b_np = fold_params(params, INPUT_SIZE)
    A_stack = jnp.asarray(A_np, compute_dtype)        # (5, 128, 128)
    b_stack = jnp.asarray(b_np, jnp.float32)          # (5, 1, 128), biases stay f32

    a_spec = _resident_spec(A_stack.shape)
    b_spec = _resident_spec(b_stack.shape)

    @jax.jit
    def fwd(x):
        B, L = x.shape
        assert L == INPUT_SIZE

        # Batch tile: minimise remainder padding; force >=2 grid steps for large
        # batches so the "parallel" axis can shard across v7x's two TensorCores.
        n_steps = pl.cdiv(B, bt_max)
        if B >= 2 * MIN_PAR_ROWS:
            n_steps = max(n_steps, 2)
        Bt = _round_up(pl.cdiv(B, n_steps), SUB_ALIGN)
        B_pad = _round_up(B, Bt)

        x_p = x.astype(compute_dtype)                  # halves input HBM bytes for bf16
        if B_pad != B:
            x_p = jnp.pad(x_p, ((0, B_pad - B), (0, 0)))   # rows only; features stay slim

        out = pl.pallas_call(
            mla_kernel,
            out_shape=jax.ShapeDtypeStruct((B_pad, OUTPUT_SIZE), jnp.float32),
            grid=(B_pad // Bt,),
            in_specs=[
                pl.BlockSpec((Bt, L), lambda i: (i, 0)),    # slim batch tile (last dim == full)
                a_spec,                                     # resident folded weights
                b_spec,                                     # resident biases
            ],
            out_specs=pl.BlockSpec((Bt, OUTPUT_SIZE), lambda i: (i, 0)),
            scratch_shapes=[pltpu.VMEM((Bt, FEAT_PAD), compute_dtype)],
            compiler_params=pltpu.CompilerParams(
                dimension_semantics=("parallel",),          # megacore-shardable (v7x)
                vmem_limit_bytes=32 * 1024 * 1024),         # explicit (v5e default is 16 MiB)
        )(x_p, A_stack, b_stack)

        return out[:B] if B_pad != B else out

    return fwd


# --------------------------- pure-JAX reference ------------------------------

def ref_forward(x, params):
    a = x[:, None, :]
    for li, (cin, cout, K, s, p) in enumerate(CONV_CFG):
        w = params[f"conv{li+1}_w"]
        b = params[f"conv{li+1}_b"]
        a = jax.lax.conv_general_dilated(
            a, w, window_strides=(s,), padding=[(p, p)],
            dimension_numbers=("NCH", "OIH", "NCH"))
        a = jax.nn.relu(a + b[None, :, None])
    out = jnp.einsum("bcl,ol->bco", a, params["lin_w"]) + params["lin_b"]
    return out[:, 0, :]


if __name__ == "__main__":
    key = jax.random.PRNGKey(0)
    pkey, xkey = jax.random.split(key)
    params = init_params(pkey)

    fwd_bf16 = make_forward(params)                               # default optimized path
    fwd_f32 = make_forward(params, compute_dtype=jnp.float32)     # tight-tolerance path

    # Small primary check (batch = 2).
    B = 2
    x = jax.random.normal(xkey, (B, INPUT_SIZE), jnp.float32)
    y_ref = ref_forward(x, params)

    y32 = jax.block_until_ready(fwd_f32(x))
    np.testing.assert_allclose(np.asarray(y32), np.asarray(y_ref), rtol=5e-5, atol=5e-5)

    y16 = jax.block_until_ready(fwd_bf16(x))
    np.testing.assert_allclose(np.asarray(y16), np.asarray(y_ref), rtol=5e-2, atol=5e-2)

    # Exercise batch-row padding (B not a tile multiple).
    x37 = jax.random.normal(jax.random.PRNGKey(1), (37, INPUT_SIZE), jnp.float32)
    y37 = jax.block_until_ready(fwd_f32(x37))
    np.testing.assert_allclose(np.asarray(y37), np.asarray(ref_forward(x37, params)),
                               rtol=5e-5, atol=5e-5)

    # Exercise a multi-step ("parallel") grid on the optimized bf16 path.
    x640 = jax.random.normal(jax.random.PRNGKey(2), (640, INPUT_SIZE), jnp.float32)
    y640 = jax.block_until_ready(fwd_bf16(x640))
    np.testing.assert_allclose(np.asarray(y640), np.asarray(ref_forward(x640, params)),
                               rtol=5e-2, atol=5e-2)

    print("KERNEL_OK")
</pallas_src>

<mosaic_0001>
module attributes {stable_mosaic.version = 11 : i64} {
  func.func @mla_kernel(%arg0: i32, %arg1: memref<16x20xf32, #tpu.memory_space<vmem>>, %arg2: memref<5x128x128xf32, #tpu.memory_space<vmem>>, %arg3: memref<5x1x128xf32, #tpu.memory_space<vmem>>, %arg4: memref<16x2xf32, #tpu.memory_space<vmem>>, %arg5: memref<16x128xf32, #tpu.memory_space<vmem>>) attributes {dimension_semantics = [#tpu.dimension_semantics<parallel>], iteration_bounds = array<i64: 1>, scalar_prefetch = 0 : i64, scratch_operands = 1 : i64, tpu.core_type = #tpu.core_type<tc>, window_params = [{transform_indices = @transform_0, window_bounds = array<i64: 16, 20>}, {pipeline_mode = #tpu.pipeline_mode<synchronous>, transform_indices = @transform_1, window_bounds = array<i64: 5, 128, 128>}, {pipeline_mode = #tpu.pipeline_mode<synchronous>, transform_indices = @transform_2, window_bounds = array<i64: 5, 1, 128>}, {transform_indices = @transform_3, window_bounds = array<i64: 16, 2>}]} {
    %cst = arith.constant 0.000000e+00 : f32
    %0 = vector.broadcast %cst : f32 to vector<16x128xf32>
    %c0 = arith.constant 0 : index
    %c0_0 = arith.constant 0 : index
    %1 = vector.load %arg5[%c0, %c0_0] : memref<16x128xf32, #tpu.memory_space<vmem>>, vector<16x128xf32>
    tpu.vector_store %arg5[%c0, %c0_0], %0 {strides = array<i32>} : memref<16x128xf32, #tpu.memory_space<vmem>>, vector<16x128xf32>,
    %c0_1 = arith.constant 0 : index
    %c0_2 = arith.constant 0 : index
    %2 = vector.load %arg1[%c0_1, %c0_2] : memref<16x20xf32, #tpu.memory_space<vmem>>, vector<16x20xf32>
    %c0_3 = arith.constant 0 : index
    %c0_4 = arith.constant 0 : index
    %3 = vector.load %arg5[%c0_3, %c0_4] : memref<16x128xf32, #tpu.memory_space<vmem>>, vector<16x20xf32>
    tpu.vector_store %arg5[%c0_3, %c0_4], %2 {strides = array<i32>} : memref<16x128xf32, #tpu.memory_space<vmem>>, vector<16x20xf32>,
    %c0_5 = arith.constant 0 : index
    %c0_6 = arith.constant 0 : index
    %4 = vector.load %arg5[%c0_5, %c0_6] : memref<16x128xf32, #tpu.memory_space<vmem>>, vector<16x128xf32>
    %c0_7 = arith.constant 0 : index
    %c0_8 = arith.constant 0 : index
    %c0_9 = arith.constant 0 : index
    %5 = vector.load %arg2[%c0_7, %c0_8, %c0_9] : memref<5x128x128xf32, #tpu.memory_space<vmem>>, vector<1x128x128xf32>
    %6 = vector.shape_cast %5 : vector<1x128x128xf32> to vector<128x128xf32>
    %cst_10 = arith.constant dense<0.000000e+00> : vector<16x128xf32>
    %7 = tpu.matmul %4, %6, %cst_10 {dimension_numbers = #tpu.dot_dimension_numbers<[1], [0], [0], [1], [0, 0, 1, 1], [], []>} : vector<16x128xf32>, vector<128x128xf32>, vector<16x128xf32> -> vector<16x128xf32>
    %c0_11 = arith.constant 0 : index
    %c0_12 = arith.constant 0 : index
    %c0_13 = arith.constant 0 : index
    %8 = vector.load %arg3[%c0_11, %c0_12, %c0_13] : memref<5x1x128xf32, #tpu.memory_space<vmem>>, vector<1x1x128xf32>
    %9 = vector.shape_cast %8 : vector<1x1x128xf32> to vector<1x128xf32>
    %10 = vector.broadcast %9 : vector<1x128xf32> to vector<16x128xf32>
    %11 = arith.addf %7, %10 : vector<16x128xf32>
    %cst_14 = arith.constant 0.000000e+00 : f32
    %12 = vector.broadcast %cst_14 : f32 to vector<16x128xf32>
    %13 = arith.maximumf %11, %12 : vector<16x128xf32>
    %c1 = arith.constant 1 : index
    %c0_15 = arith.constant 0 : index
    %c0_16 = arith.constant 0 : index
    %14 = vector.load %arg2[%c1, %c0_15, %c0_16] : memref<5x128x128xf32, #tpu.memory_space<vmem>>, vector<1x128x128xf32>
    %15 = vector.shape_cast %14 : vector<1x128x128xf32> to vector<128x128xf32>
    %cst_17 = arith.constant dense<0.000000e+00> : vector<16x128xf32>
    %16 = tpu.matmul %13, %15, %cst_17 {dimension_numbers = #tpu.dot_dimension_numbers<[1], [0], [0], [1], [0, 0, 1, 1], [], []>} : vector<16x128xf32>, vector<128x128xf32>, vector<16x128xf32> -> vector<16x128xf32>
    %c1_18 = arith.constant 1 : index
    %c0_19 = arith.constant 0 : index
    %c0_20 = arith.constant 0 : index
    %17 = vector.load %arg3[%c1_18, %c0_19, %c0_20] : memref<5x1x128xf32, #tpu.memory_space<vmem>>, vector<1x1x128xf32>
    %18 = vector.shape_cast %17 : vector<1x1x128xf32> to vector<1x128xf32>
    %19 = vector.broadcast %18 : vector<1x128xf32> to vector<16x128xf32>
    %20 = arith.addf %16, %19 : vector<16x128xf32>
    %cst_21 = arith.constant 0.000000e+00 : f32
    %21 = vector.broadcast %cst_21 : f32 to vector<16x128xf32>
    %22 = arith.maximumf %20, %21 : vector<16x128xf32>
    %c2 = arith.constant 2 : index
    %c0_22 = arith.constant 0 : index
    %c0_23 = arith.constant 0 : index
    %23 = vector.load %arg2[%c2, %c0_22, %c0_23] : memref<5x128x128xf32, #tpu.memory_space<vmem>>, vector<1x128x128xf32>
    %24 = vector.shape_cast %23 : vector<1x128x128xf32> to vector<128x128xf32>
    %cst_24 = arith.constant dense<0.000000e+00> : vector<16x128xf32>
    %25 = tpu.matmul %22, %24, %cst_24 {dimension_numbers = #tpu.dot_dimension_numbers<[1], [0], [0], [1], [0, 0, 1, 1], [], []>} : vector<16x128xf32>, vector<128x128xf32>, vector<16x128xf32> -> vector<16x128xf32>
    %c2_25 = arith.constant 2 : index
    %c0_26 = arith.constant 0 : index
    %c0_27 = arith.constant 0 : index
    %26 = vector.load %arg3[%c2_25, %c0_26, %c0_27] : memref<5x1x128xf32, #tpu.memory_space<vmem>>, vector<1x1x128xf32>
    %27 = vector.shape_cast %26 : vector<1x1x128xf32> to vector<1x128xf32>
    %28 = vector.broadcast %27 : vector<1x128xf32> to vector<16x128xf32>
    %29 = arith.addf %25, %28 : vector<16x128xf32>
    %cst_28 = arith.constant 0.000000e+00 : f32
    %30 = vector.broadcast %cst_28 : f32 to vector<16x128xf32>
    %31 = arith.maximumf %29, %30 : vector<16x128xf32>
    %c3 = arith.constant 3 : index
    %c0_29 = arith.constant 0 : index
    %c0_30 = arith.constant 0 : index
    %32 = vector.load %arg2[%c3, %c0_29, %c0_30] : memref<5x128x128xf32, #tpu.memory_space<vmem>>, vector<1x128x128xf32>
    %33 = vector.shape_cast %32 : vector<1x128x128xf32> to vector<128x128xf32>
    %cst_31 = arith.constant dense<0.000000e+00> : vector<16x128xf32>
    %34 = tpu.matmul %31, %33, %cst_31 {dimension_numbers = #tpu.dot_dimension_numbers<[1], [0], [0], [1], [0, 0, 1, 1], [], []>} : vector<16x128xf32>, vector<128x128xf32>, vector<16x128xf32> -> vector<16x128xf32>
    %c3_32 = arith.constant 3 : index
    %c0_33 = arith.constant 0 : index
    %c0_34 = arith.constant 0 : index
    %35 = vector.load %arg3[%c3_32, %c0_33, %c0_34] : memref<5x1x128xf32, #tpu.memory_space<vmem>>, vector<1x1x128xf32>
    %36 = vector.shape_cast %35 : vector<1x1x128xf32> to vector<1x128xf32>
    %37 = vector.broadcast %36 : vector<1x128xf32> to vector<16x128xf32>
    %38 = arith.addf %34, %37 : vector<16x128xf32>
    %cst_35 = arith.constant 0.000000e+00 : f32
    %39 = vector.broadcast %cst_35 : f32 to vector<16x128xf32>
    %40 = arith.maximumf %38, %39 : vector<16x128xf32>
    %c4 = arith.constant 4 : index
    %c0_36 = arith.constant 0 : index
    %c0_37 = arith.constant 0 : index
    %41 = vector.load %arg2[%c4, %c0_36, %c0_37] : memref<5x128x128xf32, #tpu.memory_space<vmem>>, vector<1x128x128xf32>
    %42 = vector.shape_cast %41 : vector<1x128x128xf32> to vector<128x128xf32>
    %cst_38 = arith.constant dense<0.000000e+00> : vector<16x128xf32>
    %43 = tpu.matmul %40, %42, %cst_38 {dimension_numbers = #tpu.dot_dimension_numbers<[1], [0], [0], [1], [0, 0, 1, 1], [], []>} : vector<16x128xf32>, vector<128x128xf32>, vector<16x128xf32> -> vector<16x128xf32>
    %c4_39 = arith.constant 4 : index
    %c0_40 = arith.constant 0 : index
    %c0_41 = arith.constant 0 : index
    %44 = vector.load %arg3[%c4_39, %c0_40, %c0_41] : memref<5x1x128xf32, #tpu.memory_space<vmem>>, vector<1x1x128xf32>
    %45 = vector.shape_cast %44 : vector<1x1x128xf32> to vector<1x128xf32>
    %46 = vector.broadcast %45 : vector<1x128xf32> to vector<16x128xf32>
    %47 = arith.addf %43, %46 : vector<16x128xf32>
    %48 = vector.extract_strided_slice %47 {offsets = [0, 0], sizes = [16, 2], strides = [1, 1]} : vector<16x128xf32> to vector<16x2xf32>
    %c0_42 = arith.constant 0 : index
    %c0_43 = arith.constant 0 : index
    %49 = vector.load %arg4[%c0_42, %c0_43] : memref<16x2xf32, #tpu.memory_space<vmem>>, vector<16x2xf32>
    tpu.vector_store %arg4[%c0_42, %c0_43], %48 {strides = array<i32>} : memref<16x2xf32, #tpu.memory_space<vmem>>, vector<16x2xf32>,
    return
  }
  func.func @transform_0(%arg0: i32) -> (i32, i32) {
    %c0_i32 = arith.constant 0 : i32
    %c0_i32_0 = arith.constant 0 : i32
    return %arg0, %c0_i32 : i32, i32
  }
  func.func @transform_1(%arg0: i32) -> (i32, i32, i32) {
    %c0_i32 = arith.constant 0 : i32
    %c0_i32_0 = arith.constant 0 : i32
    %c0_i32_1 = arith.constant 0 : i32
    %c0_i32_2 = arith.constant 0 : i32
    return %c0_i32, %c0_i32_0, %c0_i32_1 : i32, i32, i32
  }
  func.func @transform_2(%arg0: i32) -> (i32, i32, i32) {
    %c0_i32 = arith.constant 0 : i32
    %c0_i32_0 = arith.constant 0 : i32
    %c0_i32_1 = arith.constant 0 : i32
    %c0_i32_2 = arith.constant 0 : i32
    return %c0_i32, %c0_i32_0, %c0_i32_1 : i32, i32, i32
  }
  func.func @transform_3(%arg0: i32) -> (i32, i32) {
    %c0_i32 = arith.constant 0 : i32
    %c0_i32_0 = arith.constant 0 : i32
    return %arg0, %c0_i32 : i32, i32
  }
}

</mosaic_0001>

<llo_original>
// kernel: fwd.1
$region0: #{fwd.1}
  #allocation0 [shape = 'u32[]', space=smem, size = 0x4, offset = 0x4, fixed_abs, tag = 'smem constant byte address 0x4 - core index']
  #allocation1 [shape = 'u32[144,128]{1,0:T(1,128)}', space=vmem, size = 0x12000, scoped, tag = 'internal scratch']
  #allocation2 [shape = 'f32[16,128]{1,0:T(8,128)}', space=vmem, size = 0x2000, scoped, tag = 'scratch operand']
  %s0 = inlined_call_operand.vmem [shape: f32[16,20], index: 0, kind: input, shape index: {}]
  %s1 = inlined_call_operand.hbm [shape: f32[5,128,128], index: 1, kind: input, shape index: {}]
  %s2 = inlined_call_operand.vmem [shape: f32[5,1,128], index: 2, kind: input, shape index: {}]
  %s3 = inlined_call_operand.vmem [shape: f32[16,2], index: 3, kind: output, shape index: {}]
  %s4 = sld [smem:[#allocation0]]
  $region26: #{fwd.1} parent=0
    _
  %s6 = ssub.s32 1, %s4
  %s7 = scalar_select 0, %s6, %s4
  $region1: #{fwd.1} parent=0
    #allocation3 [shape = 'u8[327680]{0}', space=vmem, size = 0x50000, scoped, tag = 'input window, operand 1, single buffered']
    #allocation4 [shape = 's32[1]{0}', space=sflag, size = 0x4, scoped, tag = 'scoped memory for fwd.1']
    %8 = vsyncpa [#allocation4], 0
    // Predicated region
    $region2: #{fwd.1} parent=1 // pred_check
      _
    $region3: #{fwd.1} parent=1 // pred_check_branch
      %10 = sbr.rel (0) target = $region5
    $region4: #{fwd.1} parent=1 // pred_region
      _
    $region5: #{fwd.1} parent=1 // pred_fallthru
      _
    // Predicated region
    $region6: #{fwd.1} parent=1 // pred_check
      _
    $region7: #{fwd.1} parent=1 // pred_check_branch
      %12 = sbr.rel (0) target = $region9
    $region8: #{fwd.1} parent=1 // pred_region
      %s14 = ssub.s32 10240, 10240
      %15 = vsyncadd [#allocation4], %s14
      %s16 = sshll.u32 [#allocation3], 4
      %s17 = int_to_ptr.vmem [resolvable:$true] %s16
      %22 = dma.hbm_to_vmem [thread:$0]  %s1, 10240, %s17, [#allocation4], 128, 128, 8
    $region9: #{fwd.1} parent=1 // pred_fallthru
      _
    // Predicated region
    $region10: #{fwd.1} parent=1 // pred_check
      _
    $region11: #{fwd.1} parent=1 // pred_check_branch
      %24 = sbr.rel (0) target = $region13
    $region12: #{fwd.1} parent=1 // pred_region
      _
    $region13: #{fwd.1} parent=1 // pred_fallthru
      _
    // Predicated region
    $region14: #{fwd.1} parent=1 // pred_check
      _
    $region15: #{fwd.1} parent=1 // pred_check_branch
      %26 = sbr.rel (0) target = $region17
    $region16: #{fwd.1} parent=1 // pred_region
      %27 = dma.done [#allocation4], 10240
    $region17: #{fwd.1} parent=1 // pred_fallthru
      _
    %28 = vst [vmem:[#allocation2] sm:$0xff] 0.0
    %29 = vst [vmem:[#allocation2 + $0x8] sm:$0xff] 0.0
    %v30 = vld [vmem:[%s0] sm:$0xff]
    %v31 = vld [vmem:[%s0 + $0x8] sm:$0xff]
    %vm32 = vcmask 162816
    %33 = vst.msk [vmem:[#allocation2] sm:$0xff] %vm32, %v30
    %34 = vst.msk [vmem:[#allocation2 + $0x8] sm:$0xff] %vm32, %v31
    %v35 = vld [vmem:[#allocation2] sm:$0xff]
    %v36 = vld [vmem:[#allocation2 + $0x8] sm:$0xff]
    %v37 = vld [vmem:[#allocation3] sm:$0xff]
    %v38 = vld [vmem:[#allocation3 + $0x8] sm:$0xff]
    %v39 = vld [vmem:[#allocation3 + $0x10] sm:$0xff]
    %v40 = vld [vmem:[#allocation3 + $0x18] sm:$0xff]
    %v41 = vld [vmem:[#allocation3 + $0x20] sm:$0xff]
    %v42 = vld [vmem:[#allocation3 + $0x28] sm:$0xff]
    %v43 = vld [vmem:[#allocation3 + $0x30] sm:$0xff]
    %v44 = vld [vmem:[#allocation3 + $0x38] sm:$0xff]
    %v45 = vld [vmem:[#allocation3 + $0x40] sm:$0xff]
    %v46 = vld [vmem:[#allocation3 + $0x48] sm:$0xff]
    %v47 = vld [vmem:[#allocation3 + $0x50] sm:$0xff]
    %v48 = vld [vmem:[#allocation3 + $0x58] sm:$0xff]
    %v49 = vld [vmem:[#allocation3 + $0x60] sm:$0xff]
    %v50 = vld [vmem:[#allocation3 + $0x68] sm:$0xff]
    %v51 = vld [vmem:[#allocation3 + $0x70] sm:$0xff]
    %v52 = vld [vmem:[#allocation3 + $0x78] sm:$0xff]
    %v53 = vld [vmem:[%s2] sm:$0x1]
    %v55 = vlaneseq
    %v56 = vshrl.u32 %v55, 7
    %v57 = vsub.s32 0, %v56
    %v58 = vrot.slane %v53, %v57
    %60 = vmatprep.subr.mxu0 0.0
    %61 = vmatpush1.msra.mxu0 %v37
    %62 = vmatprep.subr.mxu0 0.0
    %63 = vmatpush1.msra.mxu0 %v38
    %64 = vmatprep.subr.mxu0 0.0
    %65 = vmatpush1.msra.mxu0 %v39
    %66 = vmatprep.subr.mxu0 0.0
    %67 = vmatpush1.msra.mxu0 %v40
    %68 = vmatprep.subr.mxu0 0.0
    %69 = vmatpush1.msra.mxu0 %v41
    %70 = vmatprep.subr.mxu0 0.0
    %71 = vmatpush1.msra.mxu0 %v42
    %72 = vmatprep.subr.mxu0 0.0
    %73 = vmatpush1.msra.mxu0 %v43
    %74 = vmatprep.subr.mxu0 0.0
    %75 = vmatpush1.msra.mxu0 %v44
    %76 = vmatprep.subr.mxu0 0.0
    %77 = vmatpush1.msra.mxu0 %v45
    %78 = vmatprep.subr.mxu0 0.0
    %79 = vmatpush1.msra.mxu0 %v46
    %80 = vmatprep.subr.mxu0 0.0
    %81 = vmatpush1.msra.mxu0 %v47
    %82 = vmatprep.subr.mxu0 0.0
    %83 = vmatpush1.msra.mxu0 %v48
    %84 = vmatprep.subr.mxu0 0.0
    %85 = vmatpush1.msra.mxu0 %v49
    %86 = vmatprep.subr.mxu0 0.0
    %87 = vmatpush1.msra.mxu0 %v50
    %88 = vmatprep.subr.mxu0 0.0
    %89 = vmatpush1.msra.mxu0 %v51
    %90 = vmatprep.subr.mxu0 0.0
    %91 = vmatpush1.msra.mxu0 %v52
    %92 = vmatprep.subr.mxu0 0.0
    %93 = vmatpush1.msra.mxu0 0.0
    %94 = vmatprep.subr.mxu0 0.0
    %95 = vmatpush1.msra.mxu0 0.0
    %96 = vmatprep.subr.mxu0 0.0
    %97 = vmatpush1.msra.mxu0 0.0
    %98 = vmatprep.subr.mxu0 0.0
    %99 = vmatpush1.msra.mxu0 0.0
    %100 = vmatprep.subr.mxu0 0.0
    %101 = vmatpush1.msra.mxu0 0.0
    %102 = vmatprep.subr.mxu0 0.0
    %103 = vmatpush1.msra.mxu0 0.0
    %104 = vmatprep.subr.mxu0 0.0
    %105 = vmatpush1.msra.mxu0 0.0
    %106 = vmatprep.subr.mxu0 0.0
    %107 = vmatpush1.msra.mxu0 0.0
    %108 = vmatprep.subr.mxu0 0.0
    %109 = vmatpush1.msra.mxu0 0.0
    %110 = vmatprep.subr.mxu0 0.0
    %111 = vmatpush1.msra.mxu0 0.0
    %112 = vmatprep.subr.mxu0 0.0
    %113 = vmatpush1.msra.mxu0 0.0
    %114 = vmatprep.subr.mxu0 0.0
    %115 = vmatpush1.msra.mxu0 0.0
    %116 = vmatprep.subr.mxu0 0.0
    %117 = vmatpush1.msra.mxu0 0.0
    %118 = vmatprep.subr.mxu0 0.0
    %119 = vmatpush1.msra.mxu0 0.0
    %120 = vmatprep.subr.mxu0 0.0
    %121 = vmatpush1.msra.mxu0 0.0
    %122 = vmatprep.subr.mxu0 0.0
    %123 = vmatpush1.msra.mxu0 0.0
    %124 = vmatprep.mubr.f32.mxu0 0.0
    %125 = vmatmul.mubr.f32.gmra.mrb[0].mxu0 %v35
    %v126 = vpop.f32.mrb[0].mxu0
    %v127 = vadd.f32 %v58, %v126
    %v128 = vpop.f32.mrb[0].mxu0
    %129 = vmatprep.mubr.f32.mxu0 0.0
    %130 = vmatmul.mubr.f32.gmra.mrb[0].mxu0 %v36
    %v131 = vpop.f32.mrb[0].mxu0
    %v132 = vadd.f32 %v58, %v131
    %v133 = vpop.f32.mrb[0].mxu0
    %134 = vdwg.mxu0
    %v135 = vmax.f32 %v127, 0.0
    %v136 = vmax.f32 %v132, 0.0
    %s137 = scalar_lea.vmem [#allocation3], 128
    %v138 = vld [vmem:[%s137] sm:$0xff]
    %v139 = vld [vmem:[%s137 + $0x8] sm:$0xff]
    %v140 = vld [vmem:[%s137 + $0x10] sm:$0xff]
    %v141 = vld [vmem:[%s137 + $0x18] sm:$0xff]
    %v142 = vld [vmem:[%s137 + $0x20] sm:$0xff]
    %v143 = vld [vmem:[%s137 + $0x28] sm:$0xff]
    %v144 = vld [vmem:[%s137 + $0x30] sm:$0xff]
    %v145 = vld [vmem:[%s137 + $0x38] sm:$0xff]
    %v146 = vld [vmem:[%s137 + $0x40] sm:$0xff]
    %v147 = vld [vmem:[%s137 + $0x48] sm:$0xff]
    %v148 = vld [vmem:[%s137 + $0x50] sm:$0xff]
    %v149 = vld [vmem:[%s137 + $0x58] sm:$0xff]
    %v150 = vld [vmem:[%s137 + $0x60] sm:$0xff]
    %v151 = vld [vmem:[%s137 + $0x68] sm:$0xff]
    %v152 = vld [vmem:[%s137 + $0x70] sm:$0xff]
    %v153 = vld [vmem:[%s137 + $0x78] sm:$0xff]
    %s154 = scalar_lea.vmem %s2, 1
    %v155 = vld [vmem:[%s154] sm:$0x1]
    %v157 = vlaneseq
    %v158 = vshrl.u32 %v157, 7
    %v159 = vsub.s32 0, %v158
    %v160 = vrot.slane %v155, %v159
    %162 = vmatprep.subr.mxu0 0.0
    %163 = vmatpush1.msra.mxu0 %v138
    %164 = vmatprep.subr.mxu0 0.0
    %165 = vmatpush1.msra.mxu0 %v139
    %166 = vmatprep.subr.mxu0 0.0
    %167 = vmatpush1.msra.mxu0 %v140
    %168 = vmatprep.subr.mxu0 0.0
    %169 = vmatpush1.msra.mxu0 %v141
    %170 = vmatprep.subr.mxu0 0.0
    %171 = vmatpush1.msra.mxu0 %v142
    %172 = vmatprep.subr.mxu0 0.0
    %173 = vmatpush1.msra.mxu0 %v143
    %174 = vmatprep.subr.mxu0 0.0
    %175 = vmatpush1.msra.mxu0 %v144
    %176 = vmatprep.subr.mxu0 0.0
    %177 = vmatpush1.msra.mxu0 %v145
    %178 = vmatprep.subr.mxu0 0.0
    %179 = vmatpush1.msra.mxu0 %v146
    %180 = vmatprep.subr.mxu0 0.0
    %181 = vmatpush1.msra.mxu0 %v147
    %182 = vmatprep.subr.mxu0 0.0
    %183 = vmatpush1.msra.mxu0 %v148
    %184 = vmatprep.subr.mxu0 0.0
    %185 = vmatpush1.msra.mxu0 %v149
    %186 = vmatprep.subr.mxu0 0.0
    %187 = vmatpush1.msra.mxu0 %v150
    %188 = vmatprep.subr.mxu0 0.0
    %189 = vmatpush1.msra.mxu0 %v151
    %190 = vmatprep.subr.mxu0 0.0
    %191 = vmatpush1.msra.mxu0 %v152
    %192 = vmatprep.subr.mxu0 0.0
    %193 = vmatpush1.msra.mxu0 %v153
    %194 = vmatprep.subr.mxu0 0.0
    %195 = vmatpush1.msra.mxu0 0.0
    %196 = vmatprep.subr.mxu0 0.0
    %197 = vmatpush1.msra.mxu0 0.0
    %198 = vmatprep.subr.mxu0 0.0
    %199 = vmatpush1.msra.mxu0 0.0
    %200 = vmatprep.subr.mxu0 0.0
    %201 = vmatpush1.msra.mxu0 0.0
    %202 = vmatprep.subr.mxu0 0.0
    %203 = vmatpush1.msra.mxu0 0.0
    %204 = vmatprep.subr.mxu0 0.0
    %205 = vmatpush1.msra.mxu0 0.0
    %206 = vmatprep.subr.mxu0 0.0
    %207 = vmatpush1.msra.mxu0 0.0
    %208 = vmatprep.subr.mxu0 0.0
    %209 = vmatpush1.msra.mxu0 0.0
    %210 = vmatprep.subr.mxu0 0.0
    %211 = vmatpush1.msra.mxu0 0.0
    %212 = vmatprep.subr.mxu0 0.0
    %213 = vmatpush1.msra.mxu0 0.0
    %214 = vmatprep.subr.mxu0 0.0
    %215 = vmatpush1.msra.mxu0 0.0
    %216 = vmatprep.subr.mxu0 0.0
    %217 = vmatpush1.msra.mxu0 0.0
    %218 = vmatprep.subr.mxu0 0.0
    %219 = vmatpush1.msra.mxu0 0.0
    %220 = vmatprep.subr.mxu0 0.0
    %221 = vmatpush1.msra.mxu0 0.0
    %222 = vmatprep.subr.mxu0 0.0
    %223 = vmatpush1.msra.mxu0 0.0
    %224 = vmatprep.subr.mxu0 0.0
    %225 = vmatpush1.msra.mxu0 0.0
    %226 = vmatprep.mubr.f32.mxu0 0.0
    %227 = vmatmul.mubr.f32.gmra.mrb[0].mxu0 %v135
    %v228 = vpop.f32.mrb[0].mxu0
    %v229 = vadd.f32 %v160, %v228
    %v230 = vpop.f32.mrb[0].mxu0
    %231 = vmatprep.mubr.f32.mxu0 0.0
    %232 = vmatmul.mubr.f32.gmra.mrb[0].mxu0 %v136
    %v233 = vpop.f32.mrb[0].mxu0
    %v234 = vadd.f32 %v160, %v233
    %v235 = vpop.f32.mrb[0].mxu0
    %236 = vdwg.mxu0
    %v237 = vmax.f32 %v229, 0.0
    %v238 = vmax.f32 %v234, 0.0
    %s239 = scalar_lea.vmem [#allocation3], 256
    %v240 = vld [vmem:[%s239] sm:$0xff]
    %v241 = vld [vmem:[%s239 + $0x8] sm:$0xff]
    %v242 = vld [vmem:[%s239 + $0x10] sm:$0xff]
    %v243 = vld [vmem:[%s239 + $0x18] sm:$0xff]
    %v244 = vld [vmem:[%s239 + $0x20] sm:$0xff]
    %v245 = vld [vmem:[%s239 + $0x28] sm:$0xff]
    %v246 = vld [vmem:[%s239 + $0x30] sm:$0xff]
    %v247 = vld [vmem:[%s239 + $0x38] sm:$0xff]
    %v248 = vld [vmem:[%s239 + $0x40] sm:$0xff]
    %v249 = vld [vmem:[%s239 + $0x48] sm:$0xff]
    %v250 = vld [vmem:[%s239 + $0x50] sm:$0xff]
    %v251 = vld [vmem:[%s239 + $0x58] sm:$0xff]
    %v252 = vld [vmem:[%s239 + $0x60] sm:$0xff]
    %v253 = vld [vmem:[%s239 + $0x68] sm:$0xff]
    %v254 = vld [vmem:[%s239 + $0x70] sm:$0xff]
    %v255 = vld [vmem:[%s239 + $0x78] sm:$0xff]
    %s256 = scalar_lea.vmem %s2, 2
    %v257 = vld [vmem:[%s256] sm:$0x1]
    %v259 = vlaneseq
    %v260 = vshrl.u32 %v259, 7
    %v261 = vsub.s32 0, %v260
    %v262 = vrot.slane %v257, %v261
    %264 = vmatprep.subr.mxu0 0.0
    %265 = vmatpush1.msra.mxu0 %v240
    %266 = vmatprep.subr.mxu0 0.0
    %267 = vmatpush1.msra.mxu0 %v241
    %268 = vmatprep.subr.mxu0 0.0
    %269 = vmatpush1.msra.mxu0 %v242
    %270 = vmatprep.subr.mxu0 0.0
    %271 = vmatpush1.msra.mxu0 %v243
    %272 = vmatprep.subr.mxu0 0.0
    %273 = vmatpush1.msra.mxu0 %v244
    %274 = vmatprep.subr.mxu0 0.0
    %275 = vmatpush1.msra.mxu0 %v245
    %276 = vmatprep.subr.mxu0 0.0
    %277 = vmatpush1.msra.mxu0 %v246
    %278 = vmatprep.subr.mxu0 0.0
    %279 = vmatpush1.msra.mxu0 %v247
    %280 = vmatprep.subr.mxu0 0.0
    %281 = vmatpush1.msra.mxu0 %v248
    %282 = vmatprep.subr.mxu0 0.0
    %283 = vmatpush1.msra.mxu0 %v249
    %284 = vmatprep.subr.mxu0 0.0
    %285 = vmatpush1.msra.mxu0 %v250
    %286 = vmatprep.subr.mxu0 0.0
    %287 = vmatpush1.msra.mxu0 %v251
    %288 = vmatprep.subr.mxu0 0.0
    %289 = vmatpush1.msra.mxu0 %v252
    %290 = vmatprep.subr.mxu0 0.0
    %291 = vmatpush1.msra.mxu0 %v253
    %292 = vmatprep.subr.mxu0 0.0
    %293 = vmatpush1.msra.mxu0 %v254
    %294 = vmatprep.subr.mxu0 0.0
    %295 = vmatpush1.msra.mxu0 %v255
    %296 = vmatprep.subr.mxu0 0.0
    %297 = vmatpush1.msra.mxu0 0.0
    %298 = vmatprep.subr.mxu0 0.0
    %299 = vmatpush1.msra.mxu0 0.0
    %300 = vmatprep.subr.mxu0 0.0
    %301 = vmatpush1.msra.mxu0 0.0
    %302 = vmatprep.subr.mxu0 0.0
    %303 = vmatpush1.msra.mxu0 0.0
    %304 = vmatprep.subr.mxu0 0.0
    %305 = vmatpush1.msra.mxu0 0.0
    %306 = vmatprep.subr.mxu0 0.0
    %307 = vmatpush1.msra.mxu0 0.0
    %308 = vmatprep.subr.mxu0 0.0
    %309 = vmatpush1.msra.mxu0 0.0
    %310 = vmatprep.subr.mxu0 0.0
    %311 = vmatpush1.msra.mxu0 0.0
    %312 = vmatprep.subr.mxu0 0.0
    %313 = vmatpush1.msra.mxu0 0.0
    %314 = vmatprep.subr.mxu0 0.0
    %315 = vmatpush1.msra.mxu0 0.0
    %316 = vmatprep.subr.mxu0 0.0
    %317 = vmatpush1.msra.mxu0 0.0
    %318 = vmatprep.subr.mxu0 0.0
    %319 = vmatpush1.msra.mxu0 0.0
    %320 = vmatprep.subr.mxu0 0.0
    %321 = vmatpush1.msra.mxu0 0.0
    %322 = vmatprep.subr.mxu0 0.0
    %323 = vmatpush1.msra.mxu0 0.0
    %324 = vmatprep.subr.mxu0 0.0
    %325 = vmatpush1.msra.mxu0 0.0
    %326 = vmatprep.subr.mxu0 0.0
    %327 = vmatpush1.msra.mxu0 0.0
    %328 = vmatprep.mubr.f32.mxu0 0.0
    %329 = vmatmul.mubr.f32.gmra.mrb[0].mxu0 %v237
    %v330 = vpop.f32.mrb[0].mxu0
    %v331 = vadd.f32 %v262, %v330
    %v332 = vpop.f32.mrb[0].mxu0
    %333 = vmatprep.mubr.f32.mxu0 0.0
    %334 = vmatmul.mubr.f32.gmra.mrb[0].mxu0 %v238
    %v335 = vpop.f32.mrb[0].mxu0
    %v336 = vadd.f32 %v262, %v335
    %v337 = vpop.f32.mrb[0].mxu0
    %338 = vdwg.mxu0
    %v339 = vmax.f32 %v331, 0.0
    %v340 = vmax.f32 %v336, 0.0
    %s341 = scalar_lea.vmem [#allocation3], 384
    %v342 = vld [vmem:[%s341] sm:$0xff]
    %v343 = vld [vmem:[%s341 + $0x8] sm:$0xff]
    %v344 = vld [vmem:[%s341 + $0x10] sm:$0xff]
    %v345 = vld [vmem:[%s341 + $0x18] sm:$0xff]
    %v346 = vld [vmem:[%s341 + $0x20] sm:$0xff]
    %v347 = vld [vmem:[%s341 + $0x28] sm:$0xff]
    %v348 = vld [vmem:[%s341 + $0x30] sm:$0xff]
    %v349 = vld [vmem:[%s341 + $0x38] sm:$0xff]
    %v350 = vld [vmem:[%s341 + $0x40] sm:$0xff]
    %v351 = vld [vmem:[%s341 + $0x48] sm:$0xff]
    %v352 = vld [vmem:[%s341 + $0x50] sm:$0xff]
    %v353 = vld [vmem:[%s341 + $0x58] sm:$0xff]
    %v354 = vld [vmem:[%s341 + $0x60] sm:$0xff]
    %v355 = vld [vmem:[%s341 + $0x68] sm:$0xff]
    %v356 = vld [vmem:[%s341 + $0x70] sm:$0xff]
    %v357 = vld [vmem:[%s341 + $0x78] sm:$0xff]
    %s358 = scalar_lea.vmem %s2, 3
    %v359 = vld [vmem:[%s358] sm:$0x1]
    %v361 = vlaneseq
    %v362 = vshrl.u32 %v361, 7
    %v363 = vsub.s32 0, %v362
    %v364 = vrot.slane %v359, %v363
    %366 = vmatprep.subr.mxu0 0.0
    %367 = vmatpush1.msra.mxu0 %v342
    %368 = vmatprep.subr.mxu0 0.0
    %369 = vmatpush1.msra.mxu0 %v343
    %370 = vmatprep.subr.mxu0 0.0
    %371 = vmatpush1.msra.mxu0 %v344
    %372 = vmatprep.subr.mxu0 0.0
    %373 = vmatpush1.msra.mxu0 %v345
    %374 = vmatprep.subr.mxu0 0.0
    %375 = vmatpush1.msra.mxu0 %v346
    %376 = vmatprep.subr.mxu0 0.0
    %377 = vmatpush1.msra.mxu0 %v347
    %378 = vmatprep.subr.mxu0 0.0
    %379 = vmatpush1.msra.mxu0 %v348
    %380 = vmatprep.subr.mxu0 0.0
    %381 = vmatpush1.msra.mxu0 %v349
    %382 = vmatprep.subr.mxu0 0.0
    %383 = vmatpush1.msra.mxu0 %v350
    %384 = vmatprep.subr.mxu0 0.0
    %385 = vmatpush1.msra.mxu0 %v351
    %386 = vmatprep.subr.mxu0 0.0
    %387 = vmatpush1.msra.mxu0 %v352
    %388 = vmatprep.subr.mxu0 0.0
    %389 = vmatpush1.msra.mxu0 %v353
    %390 = vmatprep.subr.mxu0 0.0
    %391 = vmatpush1.msra.mxu0 %v354
    %392 = vmatprep.subr.mxu0 0.0
    %393 = vmatpush1.msra.mxu0 %v355
    %394 = vmatprep.subr.mxu0 0.0
    %395 = vmatpush1.msra.mxu0 %v356
    %396 = vmatprep.subr.mxu0 0.0
    %397 = vmatpush1.msra.mxu0 %v357
    %398 = vmatprep.subr.mxu0 0.0
    %399 = vmatpush1.msra.mxu0 0.0
    %400 = vmatprep.subr.mxu0 0.0
    %401 = vmatpush1.msra.mxu0 0.0
    %402 = vmatprep.subr.mxu0 0.0
    %403 = vmatpush1.msra.mxu0 0.0
    %404 = vmatprep.subr.mxu0 0.0
    %405 = vmatpush1.msra.mxu0 0.0
    %406 = vmatprep.subr.mxu0 0.0
    %407 = vmatpush1.msra.mxu0 0.0
    %408 = vmatprep.subr.mxu0 0.0
    %409 = vmatpush1.msra.mxu0 0.0
    %410 = vmatprep.subr.mxu0 0.0
    %411 = vmatpush1.msra.mxu0 0.0
    %412 = vmatprep.subr.mxu0 0.0
    %413 = vmatpush1.msra.mxu0 0.0
    %414 = vmatprep.subr.mxu0 0.0
    %415 = vmatpush1.msra.mxu0 0.0
    %416 = vmatprep.subr.mxu0 0.0
    %417 = vmatpush1.msra.mxu0 0.0
    %418 = vmatprep.subr.mxu0 0.0
    %419 = vmatpush1.msra.mxu0 0.0
    %420 = vmatprep.subr.mxu0 0.0
    %421 = vmatpush1.msra.mxu0 0.0
    %422 = vmatprep.subr.mxu0 0.0
    %423 = vmatpush1.msra.mxu0 0.0
    %424 = vmatprep.subr.mxu0 0.0
    %425 = vmatpush1.msra.mxu0 0.0
    %426 = vmatprep.subr.mxu0 0.0
    %427 = vmatpush1.msra.mxu0 0.0
    %428 = vmatprep.subr.mxu0 0.0
    %429 = vmatpush1.msra.mxu0 0.0
    %430 = vmatprep.mubr.f32.mxu0 0.0
    %431 = vmatmul.mubr.f32.gmra.mrb[0].mxu0 %v339
    %v432 = vpop.f32.mrb[0].mxu0
    %v433 = vadd.f32 %v364, %v432
    %v434 = vpop.f32.mrb[0].mxu0
    %435 = vmatprep.mubr.f32.mxu0 0.0
    %436 = vmatmul.mubr.f32.gmra.mrb[0].mxu0 %v340
    %v437 = vpop.f32.mrb[0].mxu0
    %v438 = vadd.f32 %v364, %v437
    %v439 = vpop.f32.mrb[0].mxu0
    %440 = vdwg.mxu0
    %v441 = vmax.f32 %v433, 0.0
    %v442 = vmax.f32 %v438, 0.0
    %s443 = scalar_lea.vmem [#allocation3], 512
    %v444 = vld [vmem:[%s443] sm:$0xff]
    %v445 = vld [vmem:[%s443 + $0x8] sm:$0xff]
    %v446 = vld [vmem:[%s443 + $0x10] sm:$0xff]
    %v447 = vld [vmem:[%s443 + $0x18] sm:$0xff]
    %v448 = vld [vmem:[%s443 + $0x20] sm:$0xff]
    %v449 = vld [vmem:[%s443 + $0x28] sm:$0xff]
    %v450 = vld [vmem:[%s443 + $0x30] sm:$0xff]
    %v451 = vld [vmem:[%s443 + $0x38] sm:$0xff]
    %v452 = vld [vmem:[%s443 + $0x40] sm:$0xff]
    %v453 = vld [vmem:[%s443 + $0x48] sm:$0xff]
    %v454 = vld [vmem:[%s443 + $0x50] sm:$0xff]
    %v455 = vld [vmem:[%s443 + $0x58] sm:$0xff]
    %v456 = vld [vmem:[%s443 + $0x60] sm:$0xff]
    %v457 = vld [vmem:[%s443 + $0x68] sm:$0xff]
    %v458 = vld [vmem:[%s443 + $0x70] sm:$0xff]
    %v459 = vld [vmem:[%s443 + $0x78] sm:$0xff]
    %s460 = scalar_lea.vmem %s2, 4
    %v461 = vld [vmem:[%s460] sm:$0x1]
    %v463 = vlaneseq
    %v464 = vshrl.u32 %v463, 7
    %v465 = vsub.s32 0, %v464
    %v466 = vrot.slane %v461, %v465
    %468 = vmatprep.subr.mxu0 0.0
    %469 = vmatpush1.msra.mxu0 %v444
    %470 = vmatprep.subr.mxu0 0.0
    %471 = vmatpush1.msra.mxu0 %v445
    %472 = vmatprep.subr.mxu0 0.0
    %473 = vmatpush1.msra.mxu0 %v446
    %474 = vmatprep.subr.mxu0 0.0
    %475 = vmatpush1.msra.mxu0 %v447
    %476 = vmatprep.subr.mxu0 0.0
    %477 = vmatpush1.msra.mxu0 %v448
    %478 = vmatprep.subr.mxu0 0.0
    %479 = vmatpush1.msra.mxu0 %v449
    %480 = vmatprep.subr.mxu0 0.0
    %481 = vmatpush1.msra.mxu0 %v450
    %482 = vmatprep.subr.mxu0 0.0
    %483 = vmatpush1.msra.mxu0 %v451
    %484 = vmatprep.subr.mxu0 0.0
    %485 = vmatpush1.msra.mxu0 %v452
    %486 = vmatprep.subr.mxu0 0.0
    %487 = vmatpush1.msra.mxu0 %v453
    %488 = vmatprep.subr.mxu0 0.0
    %489 = vmatpush1.msra.mxu0 %v454
    %490 = vmatprep.subr.mxu0 0.0
    %491 = vmatpush1.msra.mxu0 %v455
    %492 = vmatprep.subr.mxu0 0.0
    %493 = vmatpush1.msra.mxu0 %v456
    %494 = vmatprep.subr.mxu0 0.0
    %495 = vmatpush1.msra.mxu0 %v457
    %496 = vmatprep.subr.mxu0 0.0
    %497 = vmatpush1.msra.mxu0 %v458
    %498 = vmatprep.subr.mxu0 0.0
    %499 = vmatpush1.msra.mxu0 %v459
    %500 = vmatprep.subr.mxu0 0.0
    %501 = vmatpush1.msra.mxu0 0.0
    %502 = vmatprep.subr.mxu0 0.0
    %503 = vmatpush1.msra.mxu0 0.0
    %504 = vmatprep.subr.mxu0 0.0
    %505 = vmatpush1.msra.mxu0 0.0
    %506 = vmatprep.subr.mxu0 0.0
    %507 = vmatpush1.msra.mxu0 0.0
    %508 = vmatprep.subr.mxu0 0.0
    %509 = vmatpush1.msra.mxu0 0.0
    %510 = vmatprep.subr.mxu0 0.0
    %511 = vmatpush1.msra.mxu0 0.0
    %512 = vmatprep.subr.mxu0 0.0
    %513 = vmatpush1.msra.mxu0 0.0
    %514 = vmatprep.subr.mxu0 0.0
    %515 = vmatpush1.msra.mxu0 0.0
    %516 = vmatprep.subr.mxu0 0.0
    %517 = vmatpush1.msra.mxu0 0.0
    %518 = vmatprep.subr.mxu0 0.0
    %519 = vmatpush1.msra.mxu0 0.0
    %520 = vmatprep.subr.mxu0 0.0
    %521 = vmatpush1.msra.mxu0 0.0
    %522 = vmatprep.subr.mxu0 0.0
    %523 = vmatpush1.msra.mxu0 0.0
    %524 = vmatprep.subr.mxu0 0.0
    %525 = vmatpush1.msra.mxu0 0.0
    %526 = vmatprep.subr.mxu0 0.0
    %527 = vmatpush1.msra.mxu0 0.0
    %528 = vmatprep.subr.mxu0 0.0
    %529 = vmatpush1.msra.mxu0 0.0
    %530 = vmatprep.subr.mxu0 0.0
    %531 = vmatpush1.msra.mxu0 0.0
    %532 = vmatprep.mubr.f32.mxu0 0.0
    %533 = vmatmul.mubr.f32.gmra.mrb[0].mxu0 %v441
    %v534 = vpop.f32.mrb[0].mxu0
    %v535 = vadd.f32 %v466, %v534
    %v536 = vpop.f32.mrb[0].mxu0
    %537 = vmatprep.mubr.f32.mxu0 0.0
    %538 = vmatmul.mubr.f32.gmra.mrb[0].mxu0 %v442
    %v539 = vpop.f32.mrb[0].mxu0
    %v540 = vadd.f32 %v466, %v539
    %v541 = vpop.f32.mrb[0].mxu0
    %542 = vdwg.mxu0
    %vm543 = vcmask 15360
    %544 = vst.msk [vmem:[%s3] sm:$0xff] %vm543, %v535
    %545 = vst.msk [vmem:[%s3 + $0x8] sm:$0xff] %vm543, %v540
    // Predicated region
    $region18: #{fwd.1} parent=1 // pred_check
      _
    $region19: #{fwd.1} parent=1 // pred_check_branch
      %547 = sbr.rel (0) target = $region21
    $region20: #{fwd.1} parent=1 // pred_region
      _
    $region21: #{fwd.1} parent=1 // pred_fallthru
      _
    // Predicated region
    $region22: #{fwd.1} parent=1 // pred_check
      _
    $region23: #{fwd.1} parent=1 // pred_check_branch
      %549 = sbr.rel (0) target = $region25
    $region24: #{fwd.1} parent=1 // pred_region
      _
    $region25: #{fwd.1} parent=1 // pred_fallthru
      _
    %550 = vsyncpa [#allocation4], 1

</llo_original>
